<compile_context>
chip_gen: v7x
topology: tpu7x:2x2x1
jax: 0.10.0
libtpu: 0.0.40
codegen_flags: <defaults>
</compile_context>

<pallas_src>
import functools

import jax
import jax.numpy as jnp
from jax.experimental import pallas as pl
from jax.experimental.pallas import tpu as pltpu

LANE = 128  # TPU lane width; all feature/class dims are zero-padded to this once at init.


# ----------------------------- fused Pallas kernels ------------------------------

def _stem_rows(cols_ref, wconv_ref, bconv_ref, wfc_ref, bfc_ref, *, batch, hw):
    """backbone (conv-as-GEMM + ReLU + GAP) -> fc_unit -> F.normalize.

    Returns a list of `batch` L2-normalized (1, LANE) embedding rows.
    For small static `batch` the per-batch tail is fully unrolled; on scale-up switch to a
    single acc.reshape(B, HW, LANE).mean(axis=1) + one (B, LANE) fc GEMM.
    """
    # conv as one (B*HW, K) x (K, 128) GEMM over every (batch, pixel) row + bias + ReLU
    acc = jnp.dot(cols_ref[...], wconv_ref[...], preferred_element_type=jnp.float32)
    acc = jnp.maximum(acc + bconv_ref[...], 0.0)                       # (B*HW, 128)

    rows = []
    for b in range(batch):
        # global average pool for batch b: sublane mean over its HW rows (XLU slot),
        # replacing the old block-diagonal O(B^2*HW) pool GEMM.
        feat = jnp.mean(acc[b * hw:(b + 1) * hw, :], axis=0, keepdims=True)   # (1, 128)

        # fc_unit (Linear); padded rows/cols of wfc are zero so padded lanes of emb are exactly 0
        emb = jnp.dot(feat, wfc_ref[...], preferred_element_type=jnp.float32) + bfc_ref[...]

        # F.normalize: x / max(||x||, 1e-12)  ==  x * rsqrt(max(||x||^2, 1e-24))   (EUP rsqrt)
        sumsq = jnp.sum(emb * emb, axis=1, keepdims=True)
        rows.append(emb * jax.lax.rsqrt(jnp.maximum(sumsq, 1e-24)))
    return rows


def _embed_kernel(cols_ref, wconv_ref, bconv_ref, wfc_ref, bfc_ref, emb_ref, *, batch, hw):
    """Inference path: L2-normalized embeddings only (no centroid DMA / logits work)."""
    rows = _stem_rows(cols_ref, wconv_ref, bconv_ref, wfc_ref, bfc_ref, batch=batch, hw=hw)
    for b, row in enumerate(rows):
        emb_ref[b:b + 1, :] = row


def _logits_kernel(cols_ref, wconv_ref, bconv_ref, wfc_ref, bfc_ref, cnt_ref, logits_ref,
                   *, batch, hw):
    """Training path: cosine logits against pre-normalized, pre-transposed centroids."""
    rows = _stem_rows(cols_ref, wconv_ref, bconv_ref, wfc_ref, bfc_ref, batch=batch, hw=hw)
    for b, row in enumerate(rows):
        logits_ref[b:b + 1, :] = jnp.dot(row, cnt_ref[...],
                                         preferred_element_type=jnp.float32)


# ------------------------------ jitted forward wrappers ---------------------------

def _im2col(x_nchw):
    """NCHW -> (B*HW, 9*Cin) im2col for a 3x3 / stride 1 / pad 1 conv (fuses under jit)."""
    x = jnp.transpose(x_nchw, (0, 2, 3, 1)).astype(jnp.float32)          # NHWC
    B, H, W, Cin = x.shape
    xp = jnp.pad(x, ((0, 0), (1, 1), (1, 1), (0, 0)))
    patches = [xp[:, i:i + H, j:j + W, :] for i in range(3) for j in range(3)]
    cols = jnp.stack(patches, axis=3).reshape(B * H * W, 9 * Cin)        # (B*HW, K)
    return cols, B, H * W


def _vmem_specs(n):
    return [pl.BlockSpec(memory_space=pltpu.MemorySpace.VMEM) for _ in range(n)]


@functools.partial(jax.jit, static_argnames=("emb_dim",))
def _forward_embed(x_nchw, conv_w_pad, conv_b_pad, fc_w_pad, fc_b_pad, *, emb_dim):
    cols, B, HW = _im2col(x_nchw)
    M, K = cols.shape
    flops = 2 * M * K * LANE + 2 * B * LANE * LANE + 4 * M * LANE
    nbytes = 4 * (M * K + K * LANE + LANE + LANE * LANE + LANE + B * LANE)
    emb_pad = pl.pallas_call(
        functools.partial(_embed_kernel, batch=B, hw=HW),
        out_shape=jax.ShapeDtypeStruct((B, LANE), jnp.float32),
        in_specs=_vmem_specs(5),
        out_specs=pl.BlockSpec(memory_space=pltpu.MemorySpace.VMEM),
        cost_estimate=pl.CostEstimate(flops=flops, transcendentals=B, bytes_accessed=nbytes),
    )(cols, conv_w_pad, conv_b_pad, fc_w_pad, fc_b_pad)
    return emb_pad[:, :emb_dim]


@functools.partial(jax.jit, static_argnames=("num_classes",))
def _forward_logits(x_nchw, conv_w_pad, conv_b_pad, fc_w_pad, fc_b_pad, cn_t_pad,
                    *, num_classes):
    cols, B, HW = _im2col(x_nchw)
    M, K = cols.shape
    flops = 2 * M * K * LANE + 4 * B * LANE * LANE + 4 * M * LANE
    nbytes = 4 * (M * K + K * LANE + LANE + 2 * LANE * LANE + LANE + B * LANE)
    logits_pad = pl.pallas_call(
        functools.partial(_logits_kernel, batch=B, hw=HW),
        out_shape=jax.ShapeDtypeStruct((B, LANE), jnp.float32),
        in_specs=_vmem_specs(6),
        out_specs=pl.BlockSpec(memory_space=pltpu.MemorySpace.VMEM),
        cost_estimate=pl.CostEstimate(flops=flops, transcendentals=B, bytes_accessed=nbytes),
    )(cols, conv_w_pad, conv_b_pad, fc_w_pad, fc_b_pad, cn_t_pad)
    return logits_pad[:, :num_classes]


def embedding_model_forward(params, x_nchw, targets=None):
    """Mirrors EmbeddingModel.forward(x, targets); dispatches to a jitted variant per path."""
    if targets is not None:
        # TODO(synk): losslayer is abstract in the reference module; implemented as
        # margin-free normalized-linear (cosine) logits. `targets` only gates the branch.
        return _forward_logits(x_nchw,
                               params["conv_w_pad"], params["conv_b_pad"],
                               params["fc_w_pad"], params["fc_b_pad"],
                               params["cn_t_pad"],
                               num_classes=params["num_classes"])
    return _forward_embed(x_nchw,
                          params["conv_w_pad"], params["conv_b_pad"],
                          params["fc_w_pad"], params["fc_b_pad"],
                          emb_dim=params["emb_dim"])


def get_centroids(params):
    return params["centroids"]


# --------------------------------- init ------------------------------------------

def init_params(key, cin=4, cconv=8, emb_dim=32, num_classes=10):
    k1, k2, k3, k4, k5 = jax.random.split(key, 5)
    conv_w = jax.random.normal(k1, (cconv, cin, 3, 3), jnp.float32) * 0.1    # OIHW (PyTorch)
    conv_b = jax.random.normal(k2, (cconv,), jnp.float32) * 0.01
    fc_w = jax.random.normal(k3, (cconv, emb_dim), jnp.float32) * 0.1
    fc_b = jax.random.normal(k4, (emb_dim,), jnp.float32) * 0.01
    centroids = jax.random.normal(k5, (num_classes, emb_dim), jnp.float32)

    # conv weight flattened to im2col column order [(kh*3 + kw)*Cin + c, Cout]
    conv_w_flat = jnp.transpose(conv_w, (2, 3, 1, 0)).reshape(9 * cin, cconv)

    # ---- one-time padding / hoisted prep (all padding is exact zero) ----
    K = 9 * cin
    conv_w_pad = jnp.zeros((K, LANE), jnp.float32).at[:, :cconv].set(conv_w_flat)
    conv_b_pad = jnp.zeros((1, LANE), jnp.float32).at[0, :cconv].set(conv_b)
    fc_w_pad = jnp.zeros((LANE, LANE), jnp.float32).at[:cconv, :emb_dim].set(fc_w)
    fc_b_pad = jnp.zeros((1, LANE), jnp.float32).at[0, :emb_dim].set(fc_b)

    # pre-normalize + pre-transpose centroids (hoisted out of the forward hot path)
    cn = centroids / jnp.maximum(
        jnp.sqrt(jnp.sum(centroids * centroids, axis=1, keepdims=True)), 1e-12)
    cn_t_pad = jnp.zeros((LANE, LANE), jnp.float32).at[:emb_dim, :num_classes].set(cn.T)

    return {
        "conv_w": conv_w, "conv_b": conv_b, "fc_w": fc_w, "fc_b": fc_b,
        "centroids": centroids,
        "conv_w_pad": conv_w_pad, "conv_b_pad": conv_b_pad,
        "fc_w_pad": fc_w_pad, "fc_b_pad": fc_b_pad,
        "cn_t_pad": cn_t_pad,
        "emb_dim": emb_dim, "num_classes": num_classes,
    }


# --------------------------- pure-JAX reference -----------------------------------

def reference_forward(params, x_nchw, targets=None):
    y = jax.lax.conv_general_dilated(
        x_nchw.astype(jnp.float32), params["conv_w"], (1, 1), "SAME",
        dimension_numbers=("NCHW", "OIHW", "NCHW"))
    y = jnp.maximum(y + params["conv_b"].reshape(1, -1, 1, 1), 0.0)
    feat = jnp.mean(y, axis=(2, 3))
    emb = feat @ params["fc_w"] + params["fc_b"].reshape(1, -1)
    emb = emb / jnp.maximum(jnp.linalg.norm(emb, axis=1, keepdims=True), 1e-12)
    if targets is not None:
        c = params["centroids"]
        cn = c / jnp.maximum(jnp.linalg.norm(c, axis=1, keepdims=True), 1e-12)
        return emb @ cn.T
    return emb


# --------------------------------- main --------------------------------------------

if __name__ == "__main__":
    key = jax.random.PRNGKey(0)
    kp, kx, kt = jax.random.split(key, 3)

    B, Cin, H, W = 2, 4, 16, 16
    num_classes = 10

    params = init_params(kp, cin=Cin, cconv=8, emb_dim=32, num_classes=num_classes)
    x = jax.random.normal(kx, (B, Cin, H, W), jnp.float32)            # NCHW, like PyTorch
    targets = jax.random.randint(kt, (B,), 0, num_classes)

    # inference path (targets is None): returns L2-normalized embeddings
    emb = jax.block_until_ready(embedding_model_forward(params, x, None))
    # training path (targets given): returns losslayer logits
    logits = jax.block_until_ready(embedding_model_forward(params, x, targets))

    emb_ref = reference_forward(params, x, None)
    logits_ref = reference_forward(params, x, targets)

    assert emb.shape == (B, 32) and logits.shape == (B, num_classes)
    assert jnp.allclose(emb, emb_ref, atol=1e-4, rtol=1e-4)
    assert jnp.allclose(logits, logits_ref, atol=1e-4, rtol=1e-4)

    print("KERNEL_OK")
</pallas_src>

<mosaic_0001>
module attributes {stable_mosaic.version = 11 : i64} {
  func.func @_embed_kernel(%arg0: memref<512x36xf32, #tpu.memory_space<vmem>>, %arg1: memref<36x128xf32, #tpu.memory_space<vmem>>, %arg2: memref<1x128xf32, #tpu.memory_space<vmem>>, %arg3: memref<128x128xf32, #tpu.memory_space<vmem>>, %arg4: memref<1x128xf32, #tpu.memory_space<vmem>>, %arg5: memref<2x128xf32, #tpu.memory_space<vmem>>) attributes {dimension_semantics = [], scalar_prefetch = 0 : i64, scratch_operands = 0 : i64, tpu.core_type = #tpu.core_type<tc>} {
    %c0 = arith.constant 0 : index
    %c0_0 = arith.constant 0 : index
    %0 = vector.load %arg0[%c0, %c0_0] : memref<512x36xf32, #tpu.memory_space<vmem>>, vector<512x36xf32>
    %c0_1 = arith.constant 0 : index
    %c0_2 = arith.constant 0 : index
    %1 = vector.load %arg1[%c0_1, %c0_2] : memref<36x128xf32, #tpu.memory_space<vmem>>, vector<36x128xf32>
    %cst = arith.constant dense<0.000000e+00> : vector<512x128xf32>
    %2 = tpu.matmul %0, %1, %cst {dimension_numbers = #tpu.dot_dimension_numbers<[1], [0], [0], [1], [0, 0, 1, 1], [], []>} : vector<512x36xf32>, vector<36x128xf32>, vector<512x128xf32> -> vector<512x128xf32>
    %c0_3 = arith.constant 0 : index
    %c0_4 = arith.constant 0 : index
    %3 = vector.load %arg2[%c0_3, %c0_4] : memref<1x128xf32, #tpu.memory_space<vmem>>, vector<1x128xf32>
    %4 = vector.broadcast %3 : vector<1x128xf32> to vector<512x128xf32>
    %5 = arith.addf %2, %4 : vector<512x128xf32>
    %cst_5 = arith.constant 0.000000e+00 : f32
    %6 = vector.broadcast %cst_5 : f32 to vector<512x128xf32>
    %7 = arith.maximumf %5, %6 : vector<512x128xf32>
    %8 = vector.extract_strided_slice %7 {offsets = [0, 0], sizes = [256, 128], strides = [1, 1]} : vector<512x128xf32> to vector<256x128xf32>
    %cst_6 = arith.constant dense<0.000000e+00> : vector<128xf32>
    %9 = vector.multi_reduction <add>, %8, %cst_6 [0] : vector<256x128xf32> to vector<128xf32>
    %10 = vector.shape_cast %9 : vector<128xf32> to vector<1x128xf32>
    %cst_7 = arith.constant 2.560000e+02 : f32
    %11 = vector.broadcast %cst_7 : f32 to vector<1x128xf32>
    %12 = arith.divf %10, %11 : vector<1x128xf32>
    %c0_8 = arith.constant 0 : index
    %c0_9 = arith.constant 0 : index
    %13 = vector.load %arg3[%c0_8, %c0_9] : memref<128x128xf32, #tpu.memory_space<vmem>>, vector<128x128xf32>
    %cst_10 = arith.constant dense<0.000000e+00> : vector<1x128xf32>
    %14 = tpu.matmul %12, %13, %cst_10 {dimension_numbers = #tpu.dot_dimension_numbers<[1], [0], [0], [1], [0, 0, 1, 1], [], []>} : vector<1x128xf32>, vector<128x128xf32>, vector<1x128xf32> -> vector<1x128xf32>
    %c0_11 = arith.constant 0 : index
    %c0_12 = arith.constant 0 : index
    %15 = vector.load %arg4[%c0_11, %c0_12] : memref<1x128xf32, #tpu.memory_space<vmem>>, vector<1x128xf32>
    %16 = arith.addf %14, %15 : vector<1x128xf32>
    %17 = arith.mulf %16, %16 : vector<1x128xf32>
    %cst_13 = arith.constant dense<0.000000e+00> : vector<1xf32>
    %18 = vector.multi_reduction <add>, %17, %cst_13 [1] : vector<1x128xf32> to vector<1xf32>
    %19 = vector.shape_cast %18 : vector<1xf32> to vector<1x1xf32>
    %cst_14 = arith.constant 1.000000e-24 : f32
    %20 = vector.broadcast %cst_14 : f32 to vector<1x1xf32>
    %21 = arith.maximumf %19, %20 : vector<1x1xf32>
    %22 = math.rsqrt %21 : vector<1x1xf32>
    %23 = vector.broadcast %22 : vector<1x1xf32> to vector<1x128xf32>
    %24 = arith.mulf %16, %23 : vector<1x128xf32>
    %25 = vector.extract_strided_slice %7 {offsets = [256, 0], sizes = [256, 128], strides = [1, 1]} : vector<512x128xf32> to vector<256x128xf32>
    %cst_15 = arith.constant dense<0.000000e+00> : vector<128xf32>
    %26 = vector.multi_reduction <add>, %25, %cst_15 [0] : vector<256x128xf32> to vector<128xf32>
    %27 = vector.shape_cast %26 : vector<128xf32> to vector<1x128xf32>
    %cst_16 = arith.constant 2.560000e+02 : f32
    %28 = vector.broadcast %cst_16 : f32 to vector<1x128xf32>
    %29 = arith.divf %27, %28 : vector<1x128xf32>
    %c0_17 = arith.constant 0 : index
    %c0_18 = arith.constant 0 : index
    %30 = vector.load %arg3[%c0_17, %c0_18] : memref<128x128xf32, #tpu.memory_space<vmem>>, vector<128x128xf32>
    %cst_19 = arith.constant dense<0.000000e+00> : vector<1x128xf32>
    %31 = tpu.matmul %29, %30, %cst_19 {dimension_numbers = #tpu.dot_dimension_numbers<[1], [0], [0], [1], [0, 0, 1, 1], [], []>} : vector<1x128xf32>, vector<128x128xf32>, vector<1x128xf32> -> vector<1x128xf32>
    %c0_20 = arith.constant 0 : index
    %c0_21 = arith.constant 0 : index
    %32 = vector.load %arg4[%c0_20, %c0_21] : memref<1x128xf32, #tpu.memory_space<vmem>>, vector<1x128xf32>
    %33 = arith.addf %31, %32 : vector<1x128xf32>
    %34 = arith.mulf %33, %33 : vector<1x128xf32>
    %cst_22 = arith.constant dense<0.000000e+00> : vector<1xf32>
    %35 = vector.multi_reduction <add>, %34, %cst_22 [1] : vector<1x128xf32> to vector<1xf32>
    %36 = vector.shape_cast %35 : vector<1xf32> to vector<1x1xf32>
    %cst_23 = arith.constant 1.000000e-24 : f32
    %37 = vector.broadcast %cst_23 : f32 to vector<1x1xf32>
    %38 = arith.maximumf %36, %37 : vector<1x1xf32>
    %39 = math.rsqrt %38 : vector<1x1xf32>
    %40 = vector.broadcast %39 : vector<1x1xf32> to vector<1x128xf32>
    %41 = arith.mulf %33, %40 : vector<1x128xf32>
    %c0_24 = arith.constant 0 : index
    %c0_25 = arith.constant 0 : index
    %42 = vector.load %arg5[%c0_24, %c0_25] : memref<2x128xf32, #tpu.memory_space<vmem>>, vector<1x128xf32>
    tpu.vector_store %arg5[%c0_24, %c0_25], %24 {strides = array<i32>} : memref<2x128xf32, #tpu.memory_space<vmem>>, vector<1x128xf32>,
    %c1 = arith.constant 1 : index
    %c0_26 = arith.constant 0 : index
    %43 = vector.load %arg5[%c1, %c0_26] : memref<2x128xf32, #tpu.memory_space<vmem>>, vector<1x128xf32>
    tpu.vector_store %arg5[%c1, %c0_26], %41 {strides = array<i32>} : memref<2x128xf32, #tpu.memory_space<vmem>>, vector<1x128xf32>,
    return
  }
}

</mosaic_0001>

<llo_original>
// kernel: _forward_embed.1
$region0: #{_forward_embed.1}
  #allocation0 [shape = 'u32[]', space=smem, size = 0x4, offset = 0x4, fixed_abs, tag = 'smem constant byte address 0x4 - core index']
  #allocation1 [shape = 'u32[144,128]{1,0:T(1,128)}', space=vmem, size = 0x12000, scoped, tag = 'internal scratch']
  %s0 = inlined_call_operand.vmem [shape: f32[512,36], index: 0, kind: input, shape index: {}]
  %s1 = inlined_call_operand.vmem [shape: f32[36,128], index: 1, kind: input, shape index: {}]
  %s2 = inlined_call_operand.vmem [shape: f32[1,128], index: 2, kind: input, shape index: {}]
  %s3 = inlined_call_operand.vmem [shape: f32[128,128], index: 3, kind: input, shape index: {}]
  %s4 = inlined_call_operand.vmem [shape: f32[1,128], index: 4, kind: input, shape index: {}]
  %s5 = inlined_call_operand.hbm [shape: f32[2,128], index: 5, kind: output, shape index: {}]
  %s6 = sld [smem:[#allocation0]]
  $region30: #{_forward_embed.1} parent=0
    _
  %s8 = ssub.s32 1, %s6
  %s9 = scalar_select 0, %s8, %s6
  $region1: #{_forward_embed.1} parent=0
    #allocation2 [shape = 'u8[1024]{0}', space=vmem, size = 0x400, scoped, tag = 'output window, operand 0, single buffered']
    #allocation3 [shape = 's32[1]{0}', space=sflag, size = 0x4, scoped, tag = 'scoped memory for _forward_embed.1']
    %10 = vsyncpa [#allocation3], 0
    // Predicated region
    $region2: #{_forward_embed.1} parent=1 // pred_check
      _
    $region3: #{_forward_embed.1} parent=1 // pred_check_branch
      %12 = sbr.rel (0) target = $region5
    $region4: #{_forward_embed.1} parent=1 // pred_region
      _
    $region5: #{_forward_embed.1} parent=1 // pred_fallthru
      _
    // Predicated region
    $region6: #{_forward_embed.1} parent=1 // pred_check
      _
    $region7: #{_forward_embed.1} parent=1 // pred_check_branch
      %14 = sbr.rel (0) target = $region9
    $region8: #{_forward_embed.1} parent=1 // pred_region
      _
    $region9: #{_forward_embed.1} parent=1 // pred_fallthru
      _
    // Predicated region
    $region10: #{_forward_embed.1} parent=1 // pred_check
      _
    $region11: #{_forward_embed.1} parent=1 // pred_check_branch
      %16 = sbr.rel (0) target = $region13
    $region12: #{_forward_embed.1} parent=1 // pred_region
      _
    $region13: #{_forward_embed.1} parent=1 // pred_fallthru
      _
    // Predicated region
    $region14: #{_forward_embed.1} parent=1 // pred_check
      _
    $region15: #{_forward_embed.1} parent=1 // pred_check_branch
      %18 = sbr.rel (0) target = $region17
    $region16: #{_forward_embed.1} parent=1 // pred_region
      _
    $region17: #{_forward_embed.1} parent=1 // pred_fallthru
      _
    // Predicated region
    $region18: #{_forward_embed.1} parent=1 // pred_check
      _
    $region19: #{_forward_embed.1} parent=1 // pred_check_branch
      %20 = sbr.rel (0) target = $region21
    $region20: #{_forward_embed.1} parent=1 // pred_region
      _
    $region21: #{_forward_embed.1} parent=1 // pred_fallthru
      _
    %v21 = vld [vmem:[%s0] sm:$0xff]
    %v22 = vld [vmem:[%s0 + $0x8] sm:$0xff]
    %v23 = vld [vmem:[%s0 + $0x10] sm:$0xff]
    %v24 = vld [vmem:[%s0 + $0x18] sm:$0xff]
    %v25 = vld [vmem:[%s0 + $0x20] sm:$0xff]
    %v26 = vld [vmem:[%s0 + $0x28] sm:$0xff]
    %v27 = vld [vmem:[%s0 + $0x30] sm:$0xff]
    %v28 = vld [vmem:[%s0 + $0x38] sm:$0xff]
    %v29 = vld [vmem:[%s0 + $0x40] sm:$0xff]
    %v30 = vld [vmem:[%s0 + $0x48] sm:$0xff]
    %v31 = vld [vmem:[%s0 + $0x50] sm:$0xff]
    %v32 = vld [vmem:[%s0 + $0x58] sm:$0xff]
    %v33 = vld [vmem:[%s0 + $0x60] sm:$0xff]
    %v34 = vld [vmem:[%s0 + $0x68] sm:$0xff]
    %v35 = vld [vmem:[%s0 + $0x70] sm:$0xff]
    %v36 = vld [vmem:[%s0 + $0x78] sm:$0xff]
    %v37 = vld [vmem:[%s0 + $0x80] sm:$0xff]
    %v38 = vld [vmem:[%s0 + $0x88] sm:$0xff]
    %v39 = vld [vmem:[%s0 + $0x90] sm:$0xff]
    %v40 = vld [vmem:[%s0 + $0x98] sm:$0xff]
    %v41 = vld [vmem:[%s0 + $0xa0] sm:$0xff]
    %v42 = vld [vmem:[%s0 + $0xa8] sm:$0xff]
    %v43 = vld [vmem:[%s0 + $0xb0] sm:$0xff]
    %v44 = vld [vmem:[%s0 + $0xb8] sm:$0xff]
    %v45 = vld [vmem:[%s0 + $0xc0] sm:$0xff]
    %v46 = vld [vmem:[%s0 + $0xc8] sm:$0xff]
    %v47 = vld [vmem:[%s0 + $0xd0] sm:$0xff]
    %v48 = vld [vmem:[%s0 + $0xd8] sm:$0xff]
    %v49 = vld [vmem:[%s0 + $0xe0] sm:$0xff]
    %v50 = vld [vmem:[%s0 + $0xe8] sm:$0xff]
    %v51 = vld [vmem:[%s0 + $0xf0] sm:$0xff]
    %v52 = vld [vmem:[%s0 + $0xf8] sm:$0xff]
    %v53 = vld [vmem:[%s0 + $0x100] sm:$0xff]
    %v54 = vld [vmem:[%s0 + $0x108] sm:$0xff]
    %v55 = vld [vmem:[%s0 + $0x110] sm:$0xff]
    %v56 = vld [vmem:[%s0 + $0x118] sm:$0xff]
    %v57 = vld [vmem:[%s0 + $0x120] sm:$0xff]
    %v58 = vld [vmem:[%s0 + $0x128] sm:$0xff]
    %v59 = vld [vmem:[%s0 + $0x130] sm:$0xff]
    %v60 = vld [vmem:[%s0 + $0x138] sm:$0xff]
    %v61 = vld [vmem:[%s0 + $0x140] sm:$0xff]
    %v62 = vld [vmem:[%s0 + $0x148] sm:$0xff]
    %v63 = vld [vmem:[%s0 + $0x150] sm:$0xff]
    %v64 = vld [vmem:[%s0 + $0x158] sm:$0xff]
    %v65 = vld [vmem:[%s0 + $0x160] sm:$0xff]
    %v66 = vld [vmem:[%s0 + $0x168] sm:$0xff]
    %v67 = vld [vmem:[%s0 + $0x170] sm:$0xff]
    %v68 = vld [vmem:[%s0 + $0x178] sm:$0xff]
    %v69 = vld [vmem:[%s0 + $0x180] sm:$0xff]
    %v70 = vld [vmem:[%s0 + $0x188] sm:$0xff]
    %v71 = vld [vmem:[%s0 + $0x190] sm:$0xff]
    %v72 = vld [vmem:[%s0 + $0x198] sm:$0xff]
    %v73 = vld [vmem:[%s0 + $0x1a0] sm:$0xff]
    %v74 = vld [vmem:[%s0 + $0x1a8] sm:$0xff]
    %v75 = vld [vmem:[%s0 + $0x1b0] sm:$0xff]
    %v76 = vld [vmem:[%s0 + $0x1b8] sm:$0xff]
    %v77 = vld [vmem:[%s0 + $0x1c0] sm:$0xff]
    %v78 = vld [vmem:[%s0 + $0x1c8] sm:$0xff]
    %v79 = vld [vmem:[%s0 + $0x1d0] sm:$0xff]
    %v80 = vld [vmem:[%s0 + $0x1d8] sm:$0xff]
    %v81 = vld [vmem:[%s0 + $0x1e0] sm:$0xff]
    %v82 = vld [vmem:[%s0 + $0x1e8] sm:$0xff]
    %v83 = vld [vmem:[%s0 + $0x1f0] sm:$0xff]
    %v84 = vld [vmem:[%s0 + $0x1f8] sm:$0xff]
    %v85 = vld [vmem:[%s1] sm:$0xff]
    %v86 = vld [vmem:[%s1 + $0x8] sm:$0xff]
    %v87 = vld [vmem:[%s1 + $0x10] sm:$0xff]
    %v88 = vld [vmem:[%s1 + $0x18] sm:$0xff]
    %v89 = vld [vmem:[%s1 + $0x20] sm:$0xf]
    %v90 = vld [vmem:[%s2] sm:$0x1]
    %v92 = vlaneseq
    %v93 = vshrl.u32 %v92, 7
    %v94 = vsub.s32 0, %v93
    %v95 = vrot.slane %v90, %v94
    %vm97 = vcmask 293888
    %v99 = vsel %vm97, %v21, 0
    %v102 = vsel %vm97, %v22, 0
    %v105 = vsel %vm97, %v23, 0
    %v108 = vsel %vm97, %v24, 0
    %v111 = vsel %vm97, %v25, 0
    %v114 = vsel %vm97, %v26, 0
    %v117 = vsel %vm97, %v27, 0
    %v120 = vsel %vm97, %v28, 0
    %v123 = vsel %vm97, %v29, 0
    %v126 = vsel %vm97, %v30, 0
    %v129 = vsel %vm97, %v31, 0
    %v132 = vsel %vm97, %v32, 0
    %v135 = vsel %vm97, %v33, 0
    %v138 = vsel %vm97, %v34, 0
    %v141 = vsel %vm97, %v35, 0
    %v144 = vsel %vm97, %v36, 0
    %v147 = vsel %vm97, %v37, 0
    %v150 = vsel %vm97, %v38, 0
    %v153 = vsel %vm97, %v39, 0
    %v156 = vsel %vm97, %v40, 0
    %v159 = vsel %vm97, %v41, 0
    %v162 = vsel %vm97, %v42, 0
    %v165 = vsel %vm97, %v43, 0
    %v168 = vsel %vm97, %v44, 0
    %v171 = vsel %vm97, %v45, 0
    %v174 = vsel %vm97, %v46, 0
    %v177 = vsel %vm97, %v47, 0
    %v180 = vsel %vm97, %v48, 0
    %v183 = vsel %vm97, %v49, 0
    %v186 = vsel %vm97, %v50, 0
    %v189 = vsel %vm97, %v51, 0
    %v192 = vsel %vm97, %v52, 0
    %v195 = vsel %vm97, %v53, 0
    %v198 = vsel %vm97, %v54, 0
    %v201 = vsel %vm97, %v55, 0
    %v204 = vsel %vm97, %v56, 0
    %v207 = vsel %vm97, %v57, 0
    %v210 = vsel %vm97, %v58, 0
    %v213 = vsel %vm97, %v59, 0
    %v216 = vsel %vm97, %v60, 0
    %v219 = vsel %vm97, %v61, 0
    %v222 = vsel %vm97, %v62, 0
    %v225 = vsel %vm97, %v63, 0
    %v228 = vsel %vm97, %v64, 0
    %v231 = vsel %vm97, %v65, 0
    %v234 = vsel %vm97, %v66, 0
    %v237 = vsel %vm97, %v67, 0
    %v240 = vsel %vm97, %v68, 0
    %v243 = vsel %vm97, %v69, 0
    %v246 = vsel %vm97, %v70, 0
    %v249 = vsel %vm97, %v71, 0
    %v252 = vsel %vm97, %v72, 0
    %v255 = vsel %vm97, %v73, 0
    %v258 = vsel %vm97, %v74, 0
    %v261 = vsel %vm97, %v75, 0
    %v264 = vsel %vm97, %v76, 0
    %v267 = vsel %vm97, %v77, 0
    %v270 = vsel %vm97, %v78, 0
    %v273 = vsel %vm97, %v79, 0
    %v276 = vsel %vm97, %v80, 0
    %v279 = vsel %vm97, %v81, 0
    %v282 = vsel %vm97, %v82, 0
    %v285 = vsel %vm97, %v83, 0
    %v288 = vsel %vm97, %v84, 0
    %vm290 = vcmask 1043456
    %v292 = vsel %vm290, %v89, 0
    %294 = vmatprep.subr.mxu0 0.0
    %295 = vmatpush1.msra.mxu0 %v85
    %296 = vmatprep.subr.mxu0 0.0
    %297 = vmatpush1.msra.mxu0 %v86
    %298 = vmatprep.subr.mxu0 0.0
    %299 = vmatpush1.msra.mxu0 %v87
    %300 = vmatprep.subr.mxu0 0.0
    %301 = vmatpush1.msra.mxu0 %v88
    %302 = vmatprep.subr.mxu0 0.0
    %303 = vmatpush1.msra.mxu0 %v292
    %304 = vmatprep.subr.mxu0 0.0
    %305 = vmatpush1.msra.mxu0 0.0
    %306 = vmatprep.subr.mxu0 0.0
    %307 = vmatpush1.msra.mxu0 0.0
    %308 = vmatprep.subr.mxu0 0.0
    %309 = vmatpush1.msra.mxu0 0.0
    %310 = vmatprep.subr.mxu0 0.0
    %311 = vmatpush1.msra.mxu0 0.0
    %312 = vmatprep.subr.mxu0 0.0
    %313 = vmatpush1.msra.mxu0 0.0
    %314 = vmatprep.subr.mxu0 0.0
    %315 = vmatpush1.msra.mxu0 0.0
    %316 = vmatprep.subr.mxu0 0.0
    %317 = vmatpush1.msra.mxu0 0.0
    %318 = vmatprep.subr.mxu0 0.0
    %319 = vmatpush1.msra.mxu0 0.0
    %320 = vmatprep.subr.mxu0 0.0
    %321 = vmatpush1.msra.mxu0 0.0
    %322 = vmatprep.subr.mxu0 0.0
    %323 = vmatpush1.msra.mxu0 0.0
    %324 = vmatprep.subr.mxu0 0.0
    %325 = vmatpush1.msra.mxu0 0.0
    %326 = vmatprep.subr.mxu0 0.0
    %327 = vmatpush1.msra.mxu0 0.0
    %328 = vmatprep.subr.mxu0 0.0
    %329 = vmatpush1.msra.mxu0 0.0
    %330 = vmatprep.subr.mxu0 0.0
    %331 = vmatpush1.msra.mxu0 0.0
    %332 = vmatprep.subr.mxu0 0.0
    %333 = vmatpush1.msra.mxu0 0.0
    %334 = vmatprep.subr.mxu0 0.0
    %335 = vmatpush1.msra.mxu0 0.0
    %336 = vmatprep.subr.mxu0 0.0
    %337 = vmatpush1.msra.mxu0 0.0
    %338 = vmatprep.subr.mxu0 0.0
    %339 = vmatpush1.msra.mxu0 0.0
    %340 = vmatprep.subr.mxu0 0.0
    %341 = vmatpush1.msra.mxu0 0.0
    %342 = vmatprep.subr.mxu0 0.0
    %343 = vmatpush1.msra.mxu0 0.0
    %344 = vmatprep.subr.mxu0 0.0
    %345 = vmatpush1.msra.mxu0 0.0
    %346 = vmatprep.subr.mxu0 0.0
    %347 = vmatpush1.msra.mxu0 0.0
    %348 = vmatprep.subr.mxu0 0.0
    %349 = vmatpush1.msra.mxu0 0.0
    %350 = vmatprep.subr.mxu0 0.0
    %351 = vmatpush1.msra.mxu0 0.0
    %352 = vmatprep.subr.mxu0 0.0
    %353 = vmatpush1.msra.mxu0 0.0
    %354 = vmatprep.subr.mxu0 0.0
    %355 = vmatpush1.msra.mxu0 0.0
    %356 = vmatprep.subr.mxu0 0.0
    %357 = vmatpush1.msra.mxu0 0.0
    %358 = vmatprep.mubr.f32.mxu0 0.0
    %359 = vmatmul.mubr.f32.gmra.mrb[0].mxu0 %v99
    %v360 = vpop.f32.mrb[0].mxu0
    %v361 = vadd.f32 %v95, %v360
    %v362 = vpop.f32.mrb[0].mxu0
    %363 = vmatprep.mubr.f32.mxu0 0.0
    %364 = vmatmul.mubr.f32.gmra.mrb[0].mxu0 %v102
    %v365 = vpop.f32.mrb[0].mxu0
    %v366 = vadd.f32 %v95, %v365
    %v367 = vpop.f32.mrb[0].mxu0
    %368 = vmatprep.mubr.f32.mxu0 0.0
    %369 = vmatmul.mubr.f32.gmra.mrb[0].mxu0 %v105
    %v370 = vpop.f32.mrb[0].mxu0
    %v371 = vadd.f32 %v95, %v370
    %v372 = vpop.f32.mrb[0].mxu0
    %373 = vmatprep.mubr.f32.mxu0 0.0
    %374 = vmatmul.mubr.f32.gmra.mrb[0].mxu0 %v108
    %v375 = vpop.f32.mrb[0].mxu0
    %v376 = vadd.f32 %v95, %v375
    %v377 = vpop.f32.mrb[0].mxu0
    %378 = vmatprep.mubr.f32.mxu0 0.0
    %379 = vmatmul.mubr.f32.gmra.mrb[0].mxu0 %v111
    %v380 = vpop.f32.mrb[0].mxu0
    %v381 = vadd.f32 %v95, %v380
    %v382 = vpop.f32.mrb[0].mxu0
    %383 = vmatprep.mubr.f32.mxu0 0.0
    %384 = vmatmul.mubr.f32.gmra.mrb[0].mxu0 %v114
    %v385 = vpop.f32.mrb[0].mxu0
    %v386 = vadd.f32 %v95, %v385
    %v387 = vpop.f32.mrb[0].mxu0
    %388 = vmatprep.mubr.f32.mxu0 0.0
    %389 = vmatmul.mubr.f32.gmra.mrb[0].mxu0 %v117
    %v390 = vpop.f32.mrb[0].mxu0
    %v391 = vadd.f32 %v95, %v390
    %v392 = vpop.f32.mrb[0].mxu0
    %393 = vmatprep.mubr.f32.mxu0 0.0
    %394 = vmatmul.mubr.f32.gmra.mrb[0].mxu0 %v120
    %v395 = vpop.f32.mrb[0].mxu0
    %v396 = vadd.f32 %v95, %v395
    %v397 = vpop.f32.mrb[0].mxu0
    %398 = vmatprep.mubr.f32.mxu0 0.0
    %399 = vmatmul.mubr.f32.gmra.mrb[0].mxu0 %v123
    %v400 = vpop.f32.mrb[0].mxu0
    %v401 = vadd.f32 %v95, %v400
    %v402 = vpop.f32.mrb[0].mxu0
    %403 = vmatprep.mubr.f32.mxu0 0.0
    %404 = vmatmul.mubr.f32.gmra.mrb[0].mxu0 %v126
    %v405 = vpop.f32.mrb[0].mxu0
    %v406 = vadd.f32 %v95, %v405
    %v407 = vpop.f32.mrb[0].mxu0
    %408 = vmatprep.mubr.f32.mxu0 0.0
    %409 = vmatmul.mubr.f32.gmra.mrb[0].mxu0 %v129
    %v410 = vpop.f32.mrb[0].mxu0
    %v411 = vadd.f32 %v95, %v410
    %v412 = vpop.f32.mrb[0].mxu0
    %413 = vmatprep.mubr.f32.mxu0 0.0
    %414 = vmatmul.mubr.f32.gmra.mrb[0].mxu0 %v132
    %v415 = vpop.f32.mrb[0].mxu0
    %v416 = vadd.f32 %v95, %v415
    %v417 = vpop.f32.mrb[0].mxu0
    %418 = vmatprep.mubr.f32.mxu0 0.0
    %419 = vmatmul.mubr.f32.gmra.mrb[0].mxu0 %v135
    %v420 = vpop.f32.mrb[0].mxu0
    %v421 = vadd.f32 %v95, %v420
    %v422 = vpop.f32.mrb[0].mxu0
    %423 = vmatprep.mubr.f32.mxu0 0.0
    %424 = vmatmul.mubr.f32.gmra.mrb[0].mxu0 %v138
    %v425 = vpop.f32.mrb[0].mxu0
    %v426 = vadd.f32 %v95, %v425
    %v427 = vpop.f32.mrb[0].mxu0
    %428 = vmatprep.mubr.f32.mxu0 0.0
    %429 = vmatmul.mubr.f32.gmra.mrb[0].mxu0 %v141
    %v430 = vpop.f32.mrb[0].mxu0
    %v431 = vadd.f32 %v95, %v430
    %v432 = vpop.f32.mrb[0].mxu0
    %433 = vmatprep.mubr.f32.mxu0 0.0
    %434 = vmatmul.mubr.f32.gmra.mrb[0].mxu0 %v144
    %v435 = vpop.f32.mrb[0].mxu0
    %v436 = vadd.f32 %v95, %v435
    %v437 = vpop.f32.mrb[0].mxu0
    %438 = vmatprep.mubr.f32.mxu0 0.0
    %439 = vmatmul.mubr.f32.gmra.mrb[0].mxu0 %v147
    %v440 = vpop.f32.mrb[0].mxu0
    %v441 = vadd.f32 %v95, %v440
    %v442 = vpop.f32.mrb[0].mxu0
    %443 = vmatprep.mubr.f32.mxu0 0.0
    %444 = vmatmul.mubr.f32.gmra.mrb[0].mxu0 %v150
    %v445 = vpop.f32.mrb[0].mxu0
    %v446 = vadd.f32 %v95, %v445
    %v447 = vpop.f32.mrb[0].mxu0
    %448 = vmatprep.mubr.f32.mxu0 0.0
    %449 = vmatmul.mubr.f32.gmra.mrb[0].mxu0 %v153
    %v450 = vpop.f32.mrb[0].mxu0
    %v451 = vadd.f32 %v95, %v450
    %v452 = vpop.f32.mrb[0].mxu0
    %453 = vmatprep.mubr.f32.mxu0 0.0
    %454 = vmatmul.mubr.f32.gmra.mrb[0].mxu0 %v156
    %v455 = vpop.f32.mrb[0].mxu0
    %v456 = vadd.f32 %v95, %v455
    %v457 = vpop.f32.mrb[0].mxu0
    %458 = vmatprep.mubr.f32.mxu0 0.0
    %459 = vmatmul.mubr.f32.gmra.mrb[0].mxu0 %v159
    %v460 = vpop.f32.mrb[0].mxu0
    %v461 = vadd.f32 %v95, %v460
    %v462 = vpop.f32.mrb[0].mxu0
    %463 = vmatprep.mubr.f32.mxu0 0.0
    %464 = vmatmul.mubr.f32.gmra.mrb[0].mxu0 %v162
    %v465 = vpop.f32.mrb[0].mxu0
    %v466 = vadd.f32 %v95, %v465
    %v467 = vpop.f32.mrb[0].mxu0
    %468 = vmatprep.mubr.f32.mxu0 0.0
    %469 = vmatmul.mubr.f32.gmra.mrb[0].mxu0 %v165
    %v470 = vpop.f32.mrb[0].mxu0
    %v471 = vadd.f32 %v95, %v470
    %v472 = vpop.f32.mrb[0].mxu0
    %473 = vmatprep.mubr.f32.mxu0 0.0
    %474 = vmatmul.mubr.f32.gmra.mrb[0].mxu0 %v168
    %v475 = vpop.f32.mrb[0].mxu0
    %v476 = vadd.f32 %v95, %v475
    %v477 = vpop.f32.mrb[0].mxu0
    %478 = vmatprep.mubr.f32.mxu0 0.0
    %479 = vmatmul.mubr.f32.gmra.mrb[0].mxu0 %v171
    %v480 = vpop.f32.mrb[0].mxu0
    %v481 = vadd.f32 %v95, %v480
    %v482 = vpop.f32.mrb[0].mxu0
    %483 = vmatprep.mubr.f32.mxu0 0.0
    %484 = vmatmul.mubr.f32.gmra.mrb[0].mxu0 %v174
    %v485 = vpop.f32.mrb[0].mxu0
    %v486 = vadd.f32 %v95, %v485
    %v487 = vpop.f32.mrb[0].mxu0
    %488 = vmatprep.mubr.f32.mxu0 0.0
    %489 = vmatmul.mubr.f32.gmra.mrb[0].mxu0 %v177
    %v490 = vpop.f32.mrb[0].mxu0
    %v491 = vadd.f32 %v95, %v490
    %v492 = vpop.f32.mrb[0].mxu0
    %493 = vmatprep.mubr.f32.mxu0 0.0
    %494 = vmatmul.mubr.f32.gmra.mrb[0].mxu0 %v180
    %v495 = vpop.f32.mrb[0].mxu0
    %v496 = vadd.f32 %v95, %v495
    %v497 = vpop.f32.mrb[0].mxu0
    %498 = vmatprep.mubr.f32.mxu0 0.0
    %499 = vmatmul.mubr.f32.gmra.mrb[0].mxu0 %v183
    %v500 = vpop.f32.mrb[0].mxu0
    %v501 = vadd.f32 %v95, %v500
    %v502 = vpop.f32.mrb[0].mxu0
    %503 = vmatprep.mubr.f32.mxu0 0.0
    %504 = vmatmul.mubr.f32.gmra.mrb[0].mxu0 %v186
    %v505 = vpop.f32.mrb[0].mxu0
    %v506 = vadd.f32 %v95, %v505
    %v507 = vpop.f32.mrb[0].mxu0
    %508 = vmatprep.mubr.f32.mxu0 0.0
    %509 = vmatmul.mubr.f32.gmra.mrb[0].mxu0 %v189
    %v510 = vpop.f32.mrb[0].mxu0
    %v511 = vadd.f32 %v95, %v510
    %v512 = vpop.f32.mrb[0].mxu0
    %513 = vmatprep.mubr.f32.mxu0 0.0
    %514 = vmatmul.mubr.f32.gmra.mrb[0].mxu0 %v192
    %v515 = vpop.f32.mrb[0].mxu0
    %v516 = vadd.f32 %v95, %v515
    %v517 = vpop.f32.mrb[0].mxu0
    %518 = vmatprep.mubr.f32.mxu0 0.0
    %519 = vmatmul.mubr.f32.gmra.mrb[0].mxu0 %v195
    %v520 = vpop.f32.mrb[0].mxu0
    %v521 = vadd.f32 %v95, %v520
    %v522 = vpop.f32.mrb[0].mxu0
    %523 = vmatprep.mubr.f32.mxu0 0.0
    %524 = vmatmul.mubr.f32.gmra.mrb[0].mxu0 %v198
    %v525 = vpop.f32.mrb[0].mxu0
    %v526 = vadd.f32 %v95, %v525
    %v527 = vpop.f32.mrb[0].mxu0
    %528 = vmatprep.mubr.f32.mxu0 0.0
    %529 = vmatmul.mubr.f32.gmra.mrb[0].mxu0 %v201
    %v530 = vpop.f32.mrb[0].mxu0
    %v531 = vadd.f32 %v95, %v530
    %v532 = vpop.f32.mrb[0].mxu0
    %533 = vmatprep.mubr.f32.mxu0 0.0
    %534 = vmatmul.mubr.f32.gmra.mrb[0].mxu0 %v204
    %v535 = vpop.f32.mrb[0].mxu0
    %v536 = vadd.f32 %v95, %v535
    %v537 = vpop.f32.mrb[0].mxu0
    %538 = vmatprep.mubr.f32.mxu0 0.0
    %539 = vmatmul.mubr.f32.gmra.mrb[0].mxu0 %v207
    %v540 = vpop.f32.mrb[0].mxu0
    %v541 = vadd.f32 %v95, %v540
    %v542 = vpop.f32.mrb[0].mxu0
    %543 = vmatprep.mubr.f32.mxu0 0.0
    %544 = vmatmul.mubr.f32.gmra.mrb[0].mxu0 %v210
    %v545 = vpop.f32.mrb[0].mxu0
    %v546 = vadd.f32 %v95, %v545
    %v547 = vpop.f32.mrb[0].mxu0
    %548 = vmatprep.mubr.f32.mxu0 0.0
    %549 = vmatmul.mubr.f32.gmra.mrb[0].mxu0 %v213
    %v550 = vpop.f32.mrb[0].mxu0
    %v551 = vadd.f32 %v95, %v550
    %v552 = vpop.f32.mrb[0].mxu0
    %553 = vmatprep.mubr.f32.mxu0 0.0
    %554 = vmatmul.mubr.f32.gmra.mrb[0].mxu0 %v216
    %v555 = vpop.f32.mrb[0].mxu0
    %v556 = vadd.f32 %v95, %v555
    %v557 = vpop.f32.mrb[0].mxu0
    %558 = vmatprep.mubr.f32.mxu0 0.0
    %559 = vmatmul.mubr.f32.gmra.mrb[0].mxu0 %v219
    %v560 = vpop.f32.mrb[0].mxu0
    %v561 = vadd.f32 %v95, %v560
    %v562 = vpop.f32.mrb[0].mxu0
    %563 = vmatprep.mubr.f32.mxu0 0.0
    %564 = vmatmul.mubr.f32.gmra.mrb[0].mxu0 %v222
    %v565 = vpop.f32.mrb[0].mxu0
    %v566 = vadd.f32 %v95, %v565
    %v567 = vpop.f32.mrb[0].mxu0
    %568 = vmatprep.mubr.f32.mxu0 0.0
    %569 = vmatmul.mubr.f32.gmra.mrb[0].mxu0 %v225
    %v570 = vpop.f32.mrb[0].mxu0
    %v571 = vadd.f32 %v95, %v570
    %v572 = vpop.f32.mrb[0].mxu0
    %573 = vmatprep.mubr.f32.mxu0 0.0
    %574 = vmatmul.mubr.f32.gmra.mrb[0].mxu0 %v228
    %v575 = vpop.f32.mrb[0].mxu0
    %v576 = vadd.f32 %v95, %v575
    %v577 = vpop.f32.mrb[0].mxu0
    %578 = vmatprep.mubr.f32.mxu0 0.0
    %579 = vmatmul.mubr.f32.gmra.mrb[0].mxu0 %v231
    %v580 = vpop.f32.mrb[0].mxu0
    %v581 = vadd.f32 %v95, %v580
    %v582 = vpop.f32.mrb[0].mxu0
    %583 = vmatprep.mubr.f32.mxu0 0.0
    %584 = vmatmul.mubr.f32.gmra.mrb[0].mxu0 %v234
    %v585 = vpop.f32.mrb[0].mxu0
    %v586 = vadd.f32 %v95, %v585
    %v587 = vpop.f32.mrb[0].mxu0
    %588 = vmatprep.mubr.f32.mxu0 0.0
    %589 = vmatmul.mubr.f32.gmra.mrb[0].mxu0 %v237
    %v590 = vpop.f32.mrb[0].mxu0
    %v591 = vadd.f32 %v95, %v590
    %v592 = vpop.f32.mrb[0].mxu0
    %593 = vmatprep.mubr.f32.mxu0 0.0
    %594 = vmatmul.mubr.f32.gmra.mrb[0].mxu0 %v240
    %v595 = vpop.f32.mrb[0].mxu0
    %v596 = vadd.f32 %v95, %v595
    %v597 = vpop.f32.mrb[0].mxu0
    %598 = vmatprep.mubr.f32.mxu0 0.0
    %599 = vmatmul.mubr.f32.gmra.mrb[0].mxu0 %v243
    %v600 = vpop.f32.mrb[0].mxu0
    %v601 = vadd.f32 %v95, %v600
    %v602 = vpop.f32.mrb[0].mxu0
    %603 = vmatprep.mubr.f32.mxu0 0.0
    %604 = vmatmul.mubr.f32.gmra.mrb[0].mxu0 %v246
    %v605 = vpop.f32.mrb[0].mxu0
    %v606 = vadd.f32 %v95, %v605
    %v607 = vpop.f32.mrb[0].mxu0
    %608 = vmatprep.mubr.f32.mxu0 0.0
    %609 = vmatmul.mubr.f32.gmra.mrb[0].mxu0 %v249
    %v610 = vpop.f32.mrb[0].mxu0
    %v611 = vadd.f32 %v95, %v610
    %v612 = vpop.f32.mrb[0].mxu0
    %613 = vmatprep.mubr.f32.mxu0 0.0
    %614 = vmatmul.mubr.f32.gmra.mrb[0].mxu0 %v252
    %v615 = vpop.f32.mrb[0].mxu0
    %v616 = vadd.f32 %v95, %v615
    %v617 = vpop.f32.mrb[0].mxu0
    %618 = vmatprep.mubr.f32.mxu0 0.0
    %619 = vmatmul.mubr.f32.gmra.mrb[0].mxu0 %v255
    %v620 = vpop.f32.mrb[0].mxu0
    %v621 = vadd.f32 %v95, %v620
    %v622 = vpop.f32.mrb[0].mxu0
    %623 = vmatprep.mubr.f32.mxu0 0.0
    %624 = vmatmul.mubr.f32.gmra.mrb[0].mxu0 %v258
    %v625 = vpop.f32.mrb[0].mxu0
    %v626 = vadd.f32 %v95, %v625
    %v627 = vpop.f32.mrb[0].mxu0
    %628 = vmatprep.mubr.f32.mxu0 0.0
    %629 = vmatmul.mubr.f32.gmra.mrb[0].mxu0 %v261
    %v630 = vpop.f32.mrb[0].mxu0
    %v631 = vadd.f32 %v95, %v630
    %v632 = vpop.f32.mrb[0].mxu0
    %633 = vmatprep.mubr.f32.mxu0 0.0
    %634 = vmatmul.mubr.f32.gmra.mrb[0].mxu0 %v264
    %v635 = vpop.f32.mrb[0].mxu0
    %v636 = vadd.f32 %v95, %v635
    %v637 = vpop.f32.mrb[0].mxu0
    %638 = vmatprep.mubr.f32.mxu0 0.0
    %639 = vmatmul.mubr.f32.gmra.mrb[0].mxu0 %v267
    %v640 = vpop.f32.mrb[0].mxu0
    %v641 = vadd.f32 %v95, %v640
    %v642 = vpop.f32.mrb[0].mxu0
    %643 = vmatprep.mubr.f32.mxu0 0.0
    %644 = vmatmul.mubr.f32.gmra.mrb[0].mxu0 %v270
    %v645 = vpop.f32.mrb[0].mxu0
    %v646 = vadd.f32 %v95, %v645
    %v647 = vpop.f32.mrb[0].mxu0
    %648 = vmatprep.mubr.f32.mxu0 0.0
    %649 = vmatmul.mubr.f32.gmra.mrb[0].mxu0 %v273
    %v650 = vpop.f32.mrb[0].mxu0
    %v651 = vadd.f32 %v95, %v650
    %v652 = vpop.f32.mrb[0].mxu0
    %653 = vmatprep.mubr.f32.mxu0 0.0
    %654 = vmatmul.mubr.f32.gmra.mrb[0].mxu0 %v276
    %v655 = vpop.f32.mrb[0].mxu0
    %v656 = vadd.f32 %v95, %v655
    %v657 = vpop.f32.mrb[0].mxu0
    %658 = vmatprep.mubr.f32.mxu0 0.0
    %659 = vmatmul.mubr.f32.gmra.mrb[0].mxu0 %v279
    %v660 = vpop.f32.mrb[0].mxu0
    %v661 = vadd.f32 %v95, %v660
    %v662 = vpop.f32.mrb[0].mxu0
    %663 = vmatprep.mubr.f32.mxu0 0.0
    %664 = vmatmul.mubr.f32.gmra.mrb[0].mxu0 %v282
    %v665 = vpop.f32.mrb[0].mxu0
    %v666 = vadd.f32 %v95, %v665
    %v667 = vpop.f32.mrb[0].mxu0
    %668 = vmatprep.mubr.f32.mxu0 0.0
    %669 = vmatmul.mubr.f32.gmra.mrb[0].mxu0 %v285
    %v670 = vpop.f32.mrb[0].mxu0
    %v671 = vadd.f32 %v95, %v670
    %v672 = vpop.f32.mrb[0].mxu0
    %673 = vmatprep.mubr.f32.mxu0 0.0
    %674 = vmatmul.mubr.f32.gmra.mrb[0].mxu0 %v288
    %v675 = vpop.f32.mrb[0].mxu0
    %v676 = vadd.f32 %v95, %v675
    %v677 = vpop.f32.mrb[0].mxu0
    %678 = vdwg.mxu0
    %v679 = vmax.f32 %v361, 0.0
    %v680 = vmax.f32 %v366, 0.0
    %v681 = vmax.f32 %v371, 0.0
    %v682 = vmax.f32 %v376, 0.0
    %v683 = vmax.f32 %v381, 0.0
    %v684 = vmax.f32 %v386, 0.0
    %v685 = vmax.f32 %v391, 0.0
    %v686 = vmax.f32 %v396, 0.0
    %v687 = vmax.f32 %v401, 0.0
    %v688 = vmax.f32 %v406, 0.0
    %v689 = vmax.f32 %v411, 0.0
    %v690 = vmax.f32 %v416, 0.0
    %v691 = vmax.f32 %v421, 0.0
    %v692 = vmax.f32 %v426, 0.0
    %v693 = vmax.f32 %v431, 0.0
    %v694 = vmax.f32 %v436, 0.0
    %v695 = vmax.f32 %v441, 0.0
    %v696 = vmax.f32 %v446, 0.0
    %v697 = vmax.f32 %v451, 0.0
    %v698 = vmax.f32 %v456, 0.0
    %v699 = vmax.f32 %v461, 0.0
    %v700 = vmax.f32 %v466, 0.0
    %v701 = vmax.f32 %v471, 0.0
    %v702 = vmax.f32 %v476, 0.0
    %v703 = vmax.f32 %v481, 0.0
    %v704 = vmax.f32 %v486, 0.0
    %v705 = vmax.f32 %v491, 0.0
    %v706 = vmax.f32 %v496, 0.0
    %v707 = vmax.f32 %v501, 0.0
    %v708 = vmax.f32 %v506, 0.0
    %v709 = vmax.f32 %v511, 0.0
    %v710 = vmax.f32 %v516, 0.0
    %v711 = vmax.f32 %v521, 0.0
    %v712 = vmax.f32 %v526, 0.0
    %v713 = vmax.f32 %v531, 0.0
    %v714 = vmax.f32 %v536, 0.0
    %v715 = vmax.f32 %v541, 0.0
    %v716 = vmax.f32 %v546, 0.0
    %v717 = vmax.f32 %v551, 0.0
    %v718 = vmax.f32 %v556, 0.0
    %v719 = vmax.f32 %v561, 0.0
    %v720 = vmax.f32 %v566, 0.0
    %v721 = vmax.f32 %v571, 0.0
    %v722 = vmax.f32 %v576, 0.0
    %v723 = vmax.f32 %v581, 0.0
    %v724 = vmax.f32 %v586, 0.0
    %v725 = vmax.f32 %v591, 0.0
    %v726 = vmax.f32 %v596, 0.0
    %v727 = vmax.f32 %v601, 0.0
    %v728 = vmax.f32 %v606, 0.0
    %v729 = vmax.f32 %v611, 0.0
    %v730 = vmax.f32 %v616, 0.0
    %v731 = vmax.f32 %v621, 0.0
    %v732 = vmax.f32 %v626, 0.0
    %v733 = vmax.f32 %v631, 0.0
    %v734 = vmax.f32 %v636, 0.0
    %v735 = vmax.f32 %v641, 0.0
    %v736 = vmax.f32 %v646, 0.0
    %v737 = vmax.f32 %v651, 0.0
    %v738 = vmax.f32 %v656, 0.0
    %v739 = vmax.f32 %v661, 0.0
    %v740 = vmax.f32 %v666, 0.0
    %v741 = vmax.f32 %v671, 0.0
    %v742 = vmax.f32 %v676, 0.0
    %v743 = vadd.f32 %v679, %v680
    %v744 = vadd.f32 %v743, %v681
    %v745 = vadd.f32 %v744, %v682
    %v746 = vadd.f32 %v745, %v683
    %v747 = vadd.f32 %v746, %v684
    %v748 = vadd.f32 %v747, %v685
    %v749 = vadd.f32 %v748, %v686
    %v750 = vadd.f32 %v749, %v687
    %v751 = vadd.f32 %v750, %v688
    %v752 = vadd.f32 %v751, %v689
    %v753 = vadd.f32 %v752, %v690
    %v754 = vadd.f32 %v753, %v691
    %v755 = vadd.f32 %v754, %v692
    %v756 = vadd.f32 %v755, %v693
    %v757 = vadd.f32 %v756, %v694
    %v758 = vadd.f32 %v757, %v695
    %v759 = vadd.f32 %v758, %v696
    %v760 = vadd.f32 %v759, %v697
    %v761 = vadd.f32 %v760, %v698
    %v762 = vadd.f32 %v761, %v699
    %v763 = vadd.f32 %v762, %v700
    %v764 = vadd.f32 %v763, %v701
    %v765 = vadd.f32 %v764, %v702
    %v766 = vadd.f32 %v765, %v703
    %v767 = vadd.f32 %v766, %v704
    %v768 = vadd.f32 %v767, %v705
    %v769 = vadd.f32 %v768, %v706
    %v770 = vadd.f32 %v769, %v707
    %v771 = vadd.f32 %v770, %v708
    %v772 = vadd.f32 %v771, %v709
    %v773 = vadd.f32 %v772, %v710
    %v774 = vrot.slane %v773, 4
    %v775 = vadd.f32 %v773, %v774
    %v776 = vrot.slane %v775, 2
    %v777 = vadd.f32 %v775, %v776
    %v778 = vrot.slane %v777, 1
    %v779 = vadd.f32 %v777, %v778
    %v780 = vrcp.pop 256.0
    %v781 = vmul.f32 %v779, %v780
    %v782 = vld [vmem:[%s3] sm:$0xff]
    %v783 = vld [vmem:[%s3 + $0x8] sm:$0xff]
    %v784 = vld [vmem:[%s3 + $0x10] sm:$0xff]
    %v785 = vld [vmem:[%s3 + $0x18] sm:$0xff]
    %v786 = vld [vmem:[%s3 + $0x20] sm:$0xff]
    %v787 = vld [vmem:[%s3 + $0x28] sm:$0xff]
    %v788 = vld [vmem:[%s3 + $0x30] sm:$0xff]
    %v789 = vld [vmem:[%s3 + $0x38] sm:$0xff]
    %v790 = vld [vmem:[%s3 + $0x40] sm:$0xff]
    %v791 = vld [vmem:[%s3 + $0x48] sm:$0xff]
    %v792 = vld [vmem:[%s3 + $0x50] sm:$0xff]
    %v793 = vld [vmem:[%s3 + $0x58] sm:$0xff]
    %v794 = vld [vmem:[%s3 + $0x60] sm:$0xff]
    %v795 = vld [vmem:[%s3 + $0x68] sm:$0xff]
    %v796 = vld [vmem:[%s3 + $0x70] sm:$0xff]
    %v797 = vld [vmem:[%s3 + $0x78] sm:$0xff]
    %v798 = vld [vmem:[%s4] sm:$0x1]
    %799 = vmatprep.subr.mxu0 0.0
    %800 = vmatpush1.msra.mxu0 %v782
    %801 = vmatprep.subr.mxu0 0.0
    %802 = vmatpush1.msra.mxu0 %v783
    %803 = vmatprep.subr.mxu0 0.0
    %804 = vmatpush1.msra.mxu0 %v784
    %805 = vmatprep.subr.mxu0 0.0
    %806 = vmatpush1.msra.mxu0 %v785
    %807 = vmatprep.subr.mxu0 0.0
    %808 = vmatpush1.msra.mxu0 %v786
    %809 = vmatprep.subr.mxu0 0.0
    %810 = vmatpush1.msra.mxu0 %v787
    %811 = vmatprep.subr.mxu0 0.0
    %812 = vmatpush1.msra.mxu0 %v788
    %813 = vmatprep.subr.mxu0 0.0
    %814 = vmatpush1.msra.mxu0 %v789
    %815 = vmatprep.subr.mxu0 0.0
    %816 = vmatpush1.msra.mxu0 %v790
    %817 = vmatprep.subr.mxu0 0.0
    %818 = vmatpush1.msra.mxu0 %v791
    %819 = vmatprep.subr.mxu0 0.0
    %820 = vmatpush1.msra.mxu0 %v792
    %821 = vmatprep.subr.mxu0 0.0
    %822 = vmatpush1.msra.mxu0 %v793
    %823 = vmatprep.subr.mxu0 0.0
    %824 = vmatpush1.msra.mxu0 %v794
    %825 = vmatprep.subr.mxu0 0.0
    %826 = vmatpush1.msra.mxu0 %v795
    %827 = vmatprep.subr.mxu0 0.0
    %828 = vmatpush1.msra.mxu0 %v796
    %829 = vmatprep.subr.mxu0 0.0
    %830 = vmatpush1.msra.mxu0 %v797
    %831 = vmatprep.subr.mxu0 0.0
    %832 = vmatpush1.msra.mxu0 0.0
    %833 = vmatprep.subr.mxu0 0.0
    %834 = vmatpush1.msra.mxu0 0.0
    %835 = vmatprep.subr.mxu0 0.0
    %836 = vmatpush1.msra.mxu0 0.0
    %837 = vmatprep.subr.mxu0 0.0
    %838 = vmatpush1.msra.mxu0 0.0
    %839 = vmatprep.subr.mxu0 0.0
    %840 = vmatpush1.msra.mxu0 0.0
    %841 = vmatprep.subr.mxu0 0.0
    %842 = vmatpush1.msra.mxu0 0.0
    %843 = vmatprep.subr.mxu0 0.0
    %844 = vmatpush1.msra.mxu0 0.0
    %845 = vmatprep.subr.mxu0 0.0
    %846 = vmatpush1.msra.mxu0 0.0
    %847 = vmatprep.subr.mxu0 0.0
    %848 = vmatpush1.msra.mxu0 0.0
    %849 = vmatprep.subr.mxu0 0.0
    %850 = vmatpush1.msra.mxu0 0.0
    %851 = vmatprep.subr.mxu0 0.0
    %852 = vmatpush1.msra.mxu0 0.0
    %853 = vmatprep.subr.mxu0 0.0
    %854 = vmatpush1.msra.mxu0 0.0
    %855 = vmatprep.subr.mxu0 0.0
    %856 = vmatpush1.msra.mxu0 0.0
    %857 = vmatprep.subr.mxu0 0.0
    %858 = vmatpush1.msra.mxu0 0.0
    %859 = vmatprep.subr.mxu0 0.0
    %860 = vmatpush1.msra.mxu0 0.0
    %861 = vmatprep.subr.mxu0 0.0
    %862 = vmatpush1.msra.mxu0 0.0
    %863 = vmatprep.mubr.f32.mxu0 0.0
    %864 = vmatmul.mubr.f32.gmra.mrb[0].mxu0 %v781
    %v865 = vpop.f32.mrb[0].mxu0
    %v866 = vadd.f32 %v798, %v865
    %v867 = vpop.f32.mrb[0].mxu0
    %868 = vdwg.mxu0
    %v869 = vmul.f32 %v866, %v866
    %vm870 = vcmask 1040384
    %v871 = vsel %vm870, %v869, 0.0
    %872 = vadd.xlane.f32.xlu0 %v871
    %v873 = vpop.xlane.xlu0 %872
    %v874 = vmax.f32 %v873, 1e-24
    %v875 = vrsqrt.pop %v874
    %v876 = vmul.f32 %v866, %v875
    %v877 = vadd.f32 %v711, %v712
    %v878 = vadd.f32 %v877, %v713
    %v879 = vadd.f32 %v878, %v714
    %v880 = vadd.f32 %v879, %v715
    %v881 = vadd.f32 %v880, %v716
    %v882 = vadd.f32 %v881, %v717
    %v883 = vadd.f32 %v882, %v718
    %v884 = vadd.f32 %v883, %v719
    %v885 = vadd.f32 %v884, %v720
    %v886 = vadd.f32 %v885, %v721
    %v887 = vadd.f32 %v886, %v722
    %v888 = vadd.f32 %v887, %v723
    %v889 = vadd.f32 %v888, %v724
    %v890 = vadd.f32 %v889, %v725
    %v891 = vadd.f32 %v890, %v726
    %v892 = vadd.f32 %v891, %v727
    %v893 = vadd.f32 %v892, %v728
    %v894 = vadd.f32 %v893, %v729
    %v895 = vadd.f32 %v894, %v730
    %v896 = vadd.f32 %v895, %v731
    %v897 = vadd.f32 %v896, %v732
    %v898 = vadd.f32 %v897, %v733
    %v899 = vadd.f32 %v898, %v734
    %v900 = vadd.f32 %v899, %v735
    %v901 = vadd.f32 %v900, %v736
    %v902 = vadd.f32 %v901, %v737
    %v903 = vadd.f32 %v902, %v738
    %v904 = vadd.f32 %v903, %v739
    %v905 = vadd.f32 %v904, %v740
    %v906 = vadd.f32 %v905, %v741
    %v907 = vadd.f32 %v906, %v742
    %v908 = vrot.slane %v907, 4
    %v909 = vadd.f32 %v907, %v908
    %v910 = vrot.slane %v909, 2
    %v911 = vadd.f32 %v909, %v910
    %v912 = vrot.slane %v911, 1
    %v913 = vadd.f32 %v911, %v912
    %v914 = vmul.f32 %v913, %v780
    %915 = vmatprep.subr.mxu0 0.0
    %916 = vmatpush1.msra.mxu0 %v782
    %917 = vmatprep.subr.mxu0 0.0
    %918 = vmatpush1.msra.mxu0 %v783
    %919 = vmatprep.subr.mxu0 0.0
    %920 = vmatpush1.msra.mxu0 %v784
    %921 = vmatprep.subr.mxu0 0.0
    %922 = vmatpush1.msra.mxu0 %v785
    %923 = vmatprep.subr.mxu0 0.0
    %924 = vmatpush1.msra.mxu0 %v786
    %925 = vmatprep.subr.mxu0 0.0
    %926 = vmatpush1.msra.mxu0 %v787
    %927 = vmatprep.subr.mxu0 0.0
    %928 = vmatpush1.msra.mxu0 %v788
    %929 = vmatprep.subr.mxu0 0.0
    %930 = vmatpush1.msra.mxu0 %v789
    %931 = vmatprep.subr.mxu0 0.0
    %932 = vmatpush1.msra.mxu0 %v790
    %933 = vmatprep.subr.mxu0 0.0
    %934 = vmatpush1.msra.mxu0 %v791
    %935 = vmatprep.subr.mxu0 0.0
    %936 = vmatpush1.msra.mxu0 %v792
    %937 = vmatprep.subr.mxu0 0.0
    %938 = vmatpush1.msra.mxu0 %v793
    %939 = vmatprep.subr.mxu0 0.0
    %940 = vmatpush1.msra.mxu0 %v794
    %941 = vmatprep.subr.mxu0 0.0
    %942 = vmatpush1.msra.mxu0 %v795
    %943 = vmatprep.subr.mxu0 0.0
    %944 = vmatpush1.msra.mxu0 %v796
    %945 = vmatprep.subr.mxu0 0.0
    %946 = vmatpush1.msra.mxu0 %v797
    %947 = vmatprep.subr.mxu0 0.0
    %948 = vmatpush1.msra.mxu0 0.0
    %949 = vmatprep.subr.mxu0 0.0
    %950 = vmatpush1.msra.mxu0 0.0
    %951 = vmatprep.subr.mxu0 0.0
    %952 = vmatpush1.msra.mxu0 0.0
    %953 = vmatprep.subr.mxu0 0.0
    %954 = vmatpush1.msra.mxu0 0.0
    %955 = vmatprep.subr.mxu0 0.0
    %956 = vmatpush1.msra.mxu0 0.0
    %957 = vmatprep.subr.mxu0 0.0
    %958 = vmatpush1.msra.mxu0 0.0
    %959 = vmatprep.subr.mxu0 0.0
    %960 = vmatpush1.msra.mxu0 0.0
    %961 = vmatprep.subr.mxu0 0.0
    %962 = vmatpush1.msra.mxu0 0.0
    %963 = vmatprep.subr.mxu0 0.0
    %964 = vmatpush1.msra.mxu0 0.0
    %965 = vmatprep.subr.mxu0 0.0
    %966 = vmatpush1.msra.mxu0 0.0
    %967 = vmatprep.subr.mxu0 0.0
    %968 = vmatpush1.msra.mxu0 0.0
    %969 = vmatprep.subr.mxu0 0.0
    %970 = vmatpush1.msra.mxu0 0.0
    %971 = vmatprep.subr.mxu0 0.0
    %972 = vmatpush1.msra.mxu0 0.0
    %973 = vmatprep.subr.mxu0 0.0
    %974 = vmatpush1.msra.mxu0 0.0
    %975 = vmatprep.subr.mxu0 0.0
    %976 = vmatpush1.msra.mxu0 0.0
    %977 = vmatprep.subr.mxu0 0.0
    %978 = vmatpush1.msra.mxu0 0.0
    %979 = vmatprep.mubr.f32.mxu0 0.0
    %980 = vmatmul.mubr.f32.gmra.mrb[0].mxu0 %v914
    %v981 = vpop.f32.mrb[0].mxu0
    %v982 = vadd.f32 %v798, %v981
    %v983 = vpop.f32.mrb[0].mxu0
    %984 = vdwg.mxu0
    %v985 = vmul.f32 %v982, %v982
    %v986 = vsel %vm870, %v985, 0.0
    %987 = vadd.xlane.f32.xlu0 %v986
    %v988 = vpop.xlane.xlu0 %987
    %v989 = vmax.f32 %v988, 1e-24
    %v990 = vrsqrt.pop %v989
    %v991 = vmul.f32 %v982, %v990
    %992 = vst [vmem:[#allocation2] sm:$0x1] %v876
    %993 = vst [vmem:[#allocation2 + $0x1] sm:$0x1] %v991
    // Predicated region
    $region22: #{_forward_embed.1} parent=1 // pred_check
      _
    $region23: #{_forward_embed.1} parent=1 // pred_check_branch
      %995 = sbr.rel (0) target = $region25
    $region24: #{_forward_embed.1} parent=1 // pred_region
      %s997 = ssub.s32 32, 32
      %998 = vsyncadd [#allocation3], %s997
      %s1000 = sshll.u32 [#allocation2], 4
      %s1001 = int_to_ptr.vmem [resolvable:$true] %s1000
      %1003 = dma.vmem_to_hbm [thread:$0]  %s1001, 32, %s5, [#allocation3]
    $region25: #{_forward_embed.1} parent=1 // pred_fallthru
      _
    // Predicated region
    $region26: #{_forward_embed.1} parent=1 // pred_check
      _
    $region27: #{_forward_embed.1} parent=1 // pred_check_branch
      %1005 = sbr.rel (0) target = $region29
    $region28: #{_forward_embed.1} parent=1 // pred_region
      %1006 = dma.done [#allocation3], 32
    $region29: #{_forward_embed.1} parent=1 // pred_fallthru
      _
    %1007 = vsyncpa [#allocation3], 1

</llo_original>
